<compile_context>
chip_gen: v7x
topology: tpu7x:2x2x1
jax: 0.10.0
libtpu: 0.0.40
codegen_flags: <defaults>
</compile_context>

<pallas_src>
import functools

import jax
import jax.numpy as jnp
from jax.experimental import pallas as pl
from jax.experimental.pallas import tpu as pltpu


def _planar_flow_kernel(z_ref, u_hat_ref, w_ref, gt_ref, b_ref, c_ref,
                        zk_ref, ldj_ref, t_scratch, *, num_layers):
    """One batch tile. Batch on lanes: (K, TN) slabs bracketed by 2 small matmuls."""
    z0 = z_ref[...].astype(jnp.float32)            # (TN, D)
    u_hat = u_hat_ref[...]                         # (K, D)  f32
    w = w_ref[...]                                 # (K, D)  f32
    gt = gt_ref[...]                               # (K, K)  gt[j, k] = w_j . u_hat_k
    b = b_ref[...]                                 # (K, 1)
    c = c_ref[...]                                 # (K, 1)  c[k] = w_k . u_hat_k

    # S[k, n] = w_k . z0[n, :] + b_k   (contract feature dims; rhs transposed)
    dn_last = (((1,), (1,)), ((), ()))
    s_acc = jax.lax.dot_general(w, z0, dn_last,
                                preferred_element_type=jnp.float32) + b   # (K, TN)

    # Serial K-layer recurrence on the lane-dense (K, TN) slab:
    #   t_k = tanh(s_k);  s_j += (w_j . u_hat_k) * t_k  for later layers j.
    for k in range(num_layers):                    # K is small: static unroll
        t_k = jnp.tanh(s_acc[k:k + 1, :])          # (1, TN)
        t_scratch[k:k + 1, :] = t_k                # direct row write, no selects
        if k + 1 < num_layers:
            s_acc = s_acc + gt[:, k:k + 1] * t_k   # (K,1)*(1,TN) -> (K, TN)

    t_all = t_scratch[...]                         # (K, TN)

    # z_out = z0 + T^T @ U_hat : contract the layer axis (dim 0 of both).
    dn_first = (((0,), (0,)), ((), ()))
    zk = z0 + jax.lax.dot_general(t_all, u_hat, dn_first,
                                  preferred_element_type=jnp.float32)     # (TN, D)

    # log-det terms, lane-dense: -log(|(1 - t_k^2) * (w_k . u_hat_k) + 1| + 1e-10)
    ldj_terms = -jnp.log(jnp.abs((1.0 - t_all * t_all) * c + 1.0) + 1e-10)  # (K, TN)
    ldj_row = jnp.sum(ldj_terms, axis=0, keepdims=True)                     # (1, TN)

    zk_ref[...] = zk.astype(zk_ref.dtype)
    ldj_ref[...] = ldj_row


def _choose_tile_n(n, tile_n):
    """Pick a batch tile: big (amortize per-step overhead), VMEM-safe, 128-aligned when tiled."""
    tile_n = max(8, min(tile_n, 8192))     # cap: (8192,32)f32 pads to ~4 MiB/buffer -> fits 32 MiB
    tile_n = min(tile_n, n)
    if tile_n >= n:
        tile_n = n
        if n >= 2048:
            # split into >= 2 tiles so "parallel" can shard across v7x's two TensorCores
            half = -(-n // 2)
            tile_n = ((half + 127) // 128) * 128
    else:
        # multi-tile: multiple of 128 keeps every block (incl. the lane-dense ldj row)
        # conforming to the (8,128) tiling constraint; never fall back to the full array.
        tile_n = max(128, (tile_n // 128) * 128)
    return tile_n


def normalizing_flow_forward(z, u, w, b, *, tile_n=4096):
    """z: (N, D); u, w: (K, D); b: (K,) -> (zk (N, D) in z.dtype, logdetjac (N, 1) f32)."""
    n, d = z.shape
    k_layers = u.shape[0]

    # --- per-layer parameter math, hoisted out of the kernel (tiny O(K*D) XLA ops) ---
    u32 = u.astype(jnp.float32)
    w32 = w.astype(jnp.float32)
    b32 = b.astype(jnp.float32)
    utw = jnp.sum(u32 * w32, axis=-1, keepdims=True)                        # (K, 1)
    w_norm = w32 / jnp.sqrt(jnp.sum(w32 * w32, axis=-1, keepdims=True))     # (K, D)
    softplus = jnp.maximum(utw, 0.0) + jnp.log1p(jnp.exp(-jnp.abs(utw)))    # stable
    u_hat = (softplus - 1.0 - utw) * w_norm + u32                           # (K, D)
    gt = jnp.dot(w32, u_hat.T)                                              # (K, K): gt[j,k]=w_j.u_hat_k
    c_col = jnp.sum(w32 * u_hat, axis=-1, keepdims=True)                    # (K, 1) = diag
    b_col = b32.reshape(k_layers, 1)                                        # (K, 1)

    tile_n = _choose_tile_n(n, tile_n)
    num_tiles = -(-n // tile_n)
    grid = (num_tiles,)

    kernel = functools.partial(_planar_flow_kernel, num_layers=k_layers)
    zk, ldj_rows = pl.pallas_call(
        kernel,
        out_shape=(
            jax.ShapeDtypeStruct((n, d), z.dtype),
            jax.ShapeDtypeStruct((1, num_tiles * tile_n), jnp.float32),
        ),
        grid=grid,
        in_specs=[
            pl.BlockSpec((tile_n, d), lambda i: (i, 0)),            # z: batch-tiled
            pl.BlockSpec((k_layers, d), lambda i: (0, 0)),          # u_hat (replicated)
            pl.BlockSpec((k_layers, d), lambda i: (0, 0)),          # w     (replicated)
            pl.BlockSpec((k_layers, k_layers), lambda i: (0, 0)),   # G^T   (replicated)
            pl.BlockSpec((k_layers, 1), lambda i: (0, 0)),          # b     (replicated)
            pl.BlockSpec((k_layers, 1), lambda i: (0, 0)),          # diag  (replicated)
        ],
        out_specs=(
            pl.BlockSpec((tile_n, d), lambda i: (i, 0)),            # zk
            pl.BlockSpec((1, tile_n), lambda i: (0, i)),            # ldj (lane-dense row)
        ),
        scratch_shapes=[pltpu.VMEM((k_layers, tile_n), jnp.float32)],
        compiler_params=pltpu.CompilerParams(
            dimension_semantics=("parallel",),
            # 32 MiB is safe on v5e/v6e (128 MiB) and v7x (64 MiB physical);
            # at tile_n <= 8192 the double-buffered in+out blocks stay under ~17 MiB.
            vmem_limit_bytes=32 * 1024 * 1024,
        ),
    )(z, u_hat, w32, gt, b_col, c_col)

    ldj = ldj_rows[0, :n].reshape(n, 1)
    return zk, ldj


def _reference_forward(z, u, w, b):
    """Pure-JAX reference mirroring the PyTorch PlanarTransform stack exactly."""
    zk = z
    ldj = jnp.zeros((z.shape[0], 1), jnp.float32)
    for k in range(u.shape[0]):
        uk = u[k:k + 1]
        wk = w[k:k + 1]
        bk = b[k]
        utw = uk @ wk.T
        w_norm = wk / jnp.linalg.norm(wk)
        u_hat = (jnp.log(1.0 + jnp.exp(utw)) - 1.0 - utw) * w_norm + uk
        tanh_arg = zk @ wk.T + bk
        t = jnp.tanh(tanh_arg)
        zk = zk + u_hat * t
        ldj = ldj - jnp.log(jnp.abs(((1.0 - t ** 2) * wk) @ u_hat.T + 1.0) + 1e-10)
    return zk, ldj


if __name__ == "__main__":
    # Small deterministic setup: batch=8, input_size=32, flow_size=4, flow_type='p'
    N, D, K = 8, 32, 4
    init_scale = 0.01

    key = jax.random.PRNGKey(0)
    kz, ku, kw, kb = jax.random.split(key, 4)
    z = jax.random.normal(kz, (N, D), dtype=jnp.float32)
    u = jax.random.normal(ku, (K, D), dtype=jnp.float32) * init_scale
    w = jax.random.normal(kw, (K, D), dtype=jnp.float32) * init_scale
    b = jax.random.normal(kb, (K,), dtype=jnp.float32) * init_scale

    zk, ldj = normalizing_flow_forward(z, u, w, b)
    zk, ldj = jax.block_until_ready((zk, ldj))

    zk_ref, ldj_ref = _reference_forward(z, u, w, b)
    assert zk.shape == (N, D) and ldj.shape == (N, 1)
    assert jnp.allclose(zk, zk_ref, atol=1e-5, rtol=1e-5)
    assert jnp.allclose(ldj, ldj_ref, atol=1e-5, rtol=1e-5)

    # Multi-tile path (partial last tile) exercising the pipelined grid and the
    # lane-dense ldj layout.
    N2 = 300
    z2 = jax.random.normal(jax.random.PRNGKey(1), (N2, D), dtype=jnp.float32)
    zk2, ldj2 = normalizing_flow_forward(z2, u, w, b, tile_n=128)
    zk2, ldj2 = jax.block_until_ready((zk2, ldj2))
    zk2_ref, ldj2_ref = _reference_forward(z2, u, w, b)
    assert zk2.shape == (N2, D) and ldj2.shape == (N2, 1)
    assert jnp.allclose(zk2, zk2_ref, atol=1e-5, rtol=1e-5)
    assert jnp.allclose(ldj2, ldj2_ref, atol=1e-5, rtol=1e-5)

    print("KERNEL_OK")
</pallas_src>

<mosaic_0001>
module attributes {stable_mosaic.version = 11 : i64} {
  func.func @_planar_flow_kernel(%arg0: i32, %arg1: memref<8x32xf32, #tpu.memory_space<vmem>>, %arg2: memref<4x32xf32, #tpu.memory_space<vmem>>, %arg3: memref<4x32xf32, #tpu.memory_space<vmem>>, %arg4: memref<4x4xf32, #tpu.memory_space<vmem>>, %arg5: memref<4x1xf32, #tpu.memory_space<vmem>>, %arg6: memref<4x1xf32, #tpu.memory_space<vmem>>, %arg7: memref<8x32xf32, #tpu.memory_space<vmem>>, %arg8: memref<1x8xf32, #tpu.memory_space<vmem>>, %arg9: memref<4x8xf32, #tpu.memory_space<vmem>>) attributes {dimension_semantics = [#tpu.dimension_semantics<parallel>], iteration_bounds = array<i64: 1>, scalar_prefetch = 0 : i64, scratch_operands = 1 : i64, tpu.core_type = #tpu.core_type<tc>, window_params = [{transform_indices = @transform_0, window_bounds = array<i64: 8, 32>}, {pipeline_mode = #tpu.pipeline_mode<synchronous>, transform_indices = @transform_1, window_bounds = array<i64: 4, 32>}, {pipeline_mode = #tpu.pipeline_mode<synchronous>, transform_indices = @transform_2, window_bounds = array<i64: 4, 32>}, {pipeline_mode = #tpu.pipeline_mode<synchronous>, transform_indices = @transform_3, window_bounds = array<i64: 4, 4>}, {pipeline_mode = #tpu.pipeline_mode<synchronous>, transform_indices = @transform_4, window_bounds = array<i64: 4, 1>}, {pipeline_mode = #tpu.pipeline_mode<synchronous>, transform_indices = @transform_5, window_bounds = array<i64: 4, 1>}, {transform_indices = @transform_6, window_bounds = array<i64: 8, 32>}, {transform_indices = @transform_7, window_bounds = array<i64: 1, 8>}]} {
    %c0 = arith.constant 0 : index
    %c0_0 = arith.constant 0 : index
    %0 = vector.load %arg1[%c0, %c0_0] : memref<8x32xf32, #tpu.memory_space<vmem>>, vector<8x32xf32>
    %c0_1 = arith.constant 0 : index
    %c0_2 = arith.constant 0 : index
    %1 = vector.load %arg2[%c0_1, %c0_2] : memref<4x32xf32, #tpu.memory_space<vmem>>, vector<4x32xf32>
    %c0_3 = arith.constant 0 : index
    %c0_4 = arith.constant 0 : index
    %2 = vector.load %arg3[%c0_3, %c0_4] : memref<4x32xf32, #tpu.memory_space<vmem>>, vector<4x32xf32>
    %c0_5 = arith.constant 0 : index
    %c0_6 = arith.constant 0 : index
    %3 = vector.load %arg4[%c0_5, %c0_6] : memref<4x4xf32, #tpu.memory_space<vmem>>, vector<4x4xf32>
    %c0_7 = arith.constant 0 : index
    %c0_8 = arith.constant 0 : index
    %4 = vector.load %arg5[%c0_7, %c0_8] : memref<4x1xf32, #tpu.memory_space<vmem>>, vector<4x1xf32>
    %c0_9 = arith.constant 0 : index
    %c0_10 = arith.constant 0 : index
    %5 = vector.load %arg6[%c0_9, %c0_10] : memref<4x1xf32, #tpu.memory_space<vmem>>, vector<4x1xf32>
    %cst = arith.constant dense<0.000000e+00> : vector<4x8xf32>
    %6 = tpu.matmul %2, %0, %cst {dimension_numbers = #tpu.dot_dimension_numbers<[1], [1], [0], [0], [0, 0, 1, 0], [], []>} : vector<4x32xf32>, vector<8x32xf32>, vector<4x8xf32> -> vector<4x8xf32>
    %7 = vector.broadcast %4 : vector<4x1xf32> to vector<4x8xf32>
    %8 = arith.addf %6, %7 : vector<4x8xf32>
    %9 = vector.extract_strided_slice %8 {offsets = [0, 0], sizes = [1, 8], strides = [1, 1]} : vector<4x8xf32> to vector<1x8xf32>
    %10 = math.tanh %9 : vector<1x8xf32>
    %c0_11 = arith.constant 0 : index
    %c0_12 = arith.constant 0 : index
    %11 = vector.load %arg9[%c0_11, %c0_12] : memref<4x8xf32, #tpu.memory_space<vmem>>, vector<1x8xf32>
    tpu.vector_store %arg9[%c0_11, %c0_12], %10 {strides = array<i32>} : memref<4x8xf32, #tpu.memory_space<vmem>>, vector<1x8xf32>,
    %12 = vector.extract_strided_slice %3 {offsets = [0, 0], sizes = [4, 1], strides = [1, 1]} : vector<4x4xf32> to vector<4x1xf32>
    %13 = vector.broadcast %12 : vector<4x1xf32> to vector<4x8xf32>
    %14 = vector.broadcast %10 : vector<1x8xf32> to vector<4x8xf32>
    %15 = arith.mulf %13, %14 : vector<4x8xf32>
    %16 = arith.addf %8, %15 : vector<4x8xf32>
    %17 = vector.extract_strided_slice %16 {offsets = [1, 0], sizes = [1, 8], strides = [1, 1]} : vector<4x8xf32> to vector<1x8xf32>
    %18 = math.tanh %17 : vector<1x8xf32>
    %c1 = arith.constant 1 : index
    %c0_13 = arith.constant 0 : index
    %19 = vector.load %arg9[%c1, %c0_13] : memref<4x8xf32, #tpu.memory_space<vmem>>, vector<1x8xf32>
    tpu.vector_store %arg9[%c1, %c0_13], %18 {strides = array<i32>} : memref<4x8xf32, #tpu.memory_space<vmem>>, vector<1x8xf32>,
    %20 = vector.extract_strided_slice %3 {offsets = [0, 1], sizes = [4, 1], strides = [1, 1]} : vector<4x4xf32> to vector<4x1xf32>
    %21 = vector.broadcast %20 : vector<4x1xf32> to vector<4x8xf32>
    %22 = vector.broadcast %18 : vector<1x8xf32> to vector<4x8xf32>
    %23 = arith.mulf %21, %22 : vector<4x8xf32>
    %24 = arith.addf %16, %23 : vector<4x8xf32>
    %25 = vector.extract_strided_slice %24 {offsets = [2, 0], sizes = [1, 8], strides = [1, 1]} : vector<4x8xf32> to vector<1x8xf32>
    %26 = math.tanh %25 : vector<1x8xf32>
    %c2 = arith.constant 2 : index
    %c0_14 = arith.constant 0 : index
    %27 = vector.load %arg9[%c2, %c0_14] : memref<4x8xf32, #tpu.memory_space<vmem>>, vector<1x8xf32>
    tpu.vector_store %arg9[%c2, %c0_14], %26 {strides = array<i32>} : memref<4x8xf32, #tpu.memory_space<vmem>>, vector<1x8xf32>,
    %28 = vector.extract_strided_slice %3 {offsets = [0, 2], sizes = [4, 1], strides = [1, 1]} : vector<4x4xf32> to vector<4x1xf32>
    %29 = vector.broadcast %28 : vector<4x1xf32> to vector<4x8xf32>
    %30 = vector.broadcast %26 : vector<1x8xf32> to vector<4x8xf32>
    %31 = arith.mulf %29, %30 : vector<4x8xf32>
    %32 = arith.addf %24, %31 : vector<4x8xf32>
    %33 = vector.extract_strided_slice %32 {offsets = [3, 0], sizes = [1, 8], strides = [1, 1]} : vector<4x8xf32> to vector<1x8xf32>
    %34 = math.tanh %33 : vector<1x8xf32>
    %c3 = arith.constant 3 : index
    %c0_15 = arith.constant 0 : index
    %35 = vector.load %arg9[%c3, %c0_15] : memref<4x8xf32, #tpu.memory_space<vmem>>, vector<1x8xf32>
    tpu.vector_store %arg9[%c3, %c0_15], %34 {strides = array<i32>} : memref<4x8xf32, #tpu.memory_space<vmem>>, vector<1x8xf32>,
    %c0_16 = arith.constant 0 : index
    %c0_17 = arith.constant 0 : index
    %36 = vector.load %arg9[%c0_16, %c0_17] : memref<4x8xf32, #tpu.memory_space<vmem>>, vector<4x8xf32>
    %cst_18 = arith.constant dense<0.000000e+00> : vector<8x32xf32>
    %37 = tpu.matmul %36, %1, %cst_18 {dimension_numbers = #tpu.dot_dimension_numbers<[0], [0], [1], [1], [0, 1, 1, 1], [], []>} : vector<4x8xf32>, vector<4x32xf32>, vector<8x32xf32> -> vector<8x32xf32>
    %38 = arith.addf %0, %37 : vector<8x32xf32>
    %39 = arith.mulf %36, %36 : vector<4x8xf32>
    %cst_19 = arith.constant 1.000000e+00 : f32
    %40 = vector.broadcast %cst_19 : f32 to vector<4x8xf32>
    %41 = arith.subf %40, %39 : vector<4x8xf32>
    %42 = vector.broadcast %5 : vector<4x1xf32> to vector<4x8xf32>
    %43 = arith.mulf %41, %42 : vector<4x8xf32>
    %cst_20 = arith.constant 1.000000e+00 : f32
    %44 = vector.broadcast %cst_20 : f32 to vector<4x8xf32>
    %45 = arith.addf %43, %44 : vector<4x8xf32>
    %46 = math.absf %45 : vector<4x8xf32>
    %cst_21 = arith.constant 1.000000e-10 : f32
    %47 = vector.broadcast %cst_21 : f32 to vector<4x8xf32>
    %48 = arith.addf %46, %47 : vector<4x8xf32>
    %49 = math.log %48 : vector<4x8xf32>
    %cst_22 = arith.constant 0.000000e+00 : f32
    %50 = vector.broadcast %cst_22 : f32 to vector<4x8xf32>
    %51 = arith.subf %50, %49 : vector<4x8xf32>
    %cst_23 = arith.constant dense<0.000000e+00> : vector<8xf32>
    %52 = vector.multi_reduction <add>, %51, %cst_23 [0] : vector<4x8xf32> to vector<8xf32>
    %53 = vector.shape_cast %52 : vector<8xf32> to vector<1x8xf32>
    %c0_24 = arith.constant 0 : index
    %c0_25 = arith.constant 0 : index
    %54 = vector.load %arg7[%c0_24, %c0_25] : memref<8x32xf32, #tpu.memory_space<vmem>>, vector<8x32xf32>
    tpu.vector_store %arg7[%c0_24, %c0_25], %38 {strides = array<i32>} : memref<8x32xf32, #tpu.memory_space<vmem>>, vector<8x32xf32>,
    %c0_26 = arith.constant 0 : index
    %c0_27 = arith.constant 0 : index
    %55 = vector.load %arg8[%c0_26, %c0_27] : memref<1x8xf32, #tpu.memory_space<vmem>>, vector<1x8xf32>
    tpu.vector_store %arg8[%c0_26, %c0_27], %53 {strides = array<i32>} : memref<1x8xf32, #tpu.memory_space<vmem>>, vector<1x8xf32>,
    return
  }
  func.func @transform_0(%arg0: i32) -> (i32, i32) {
    %c0_i32 = arith.constant 0 : i32
    %c0_i32_0 = arith.constant 0 : i32
    return %arg0, %c0_i32 : i32, i32
  }
  func.func @transform_1(%arg0: i32) -> (i32, i32) {
    %c0_i32 = arith.constant 0 : i32
    %c0_i32_0 = arith.constant 0 : i32
    %c0_i32_1 = arith.constant 0 : i32
    return %c0_i32, %c0_i32_0 : i32, i32
  }
  func.func @transform_2(%arg0: i32) -> (i32, i32) {
    %c0_i32 = arith.constant 0 : i32
    %c0_i32_0 = arith.constant 0 : i32
    %c0_i32_1 = arith.constant 0 : i32
    return %c0_i32, %c0_i32_0 : i32, i32
  }
  func.func @transform_3(%arg0: i32) -> (i32, i32) {
    %c0_i32 = arith.constant 0 : i32
    %c0_i32_0 = arith.constant 0 : i32
    %c0_i32_1 = arith.constant 0 : i32
    return %c0_i32, %c0_i32_0 : i32, i32
  }
  func.func @transform_4(%arg0: i32) -> (i32, i32) {
    %c0_i32 = arith.constant 0 : i32
    %c0_i32_0 = arith.constant 0 : i32
    %c0_i32_1 = arith.constant 0 : i32
    return %c0_i32, %c0_i32_0 : i32, i32
  }
  func.func @transform_5(%arg0: i32) -> (i32, i32) {
    %c0_i32 = arith.constant 0 : i32
    %c0_i32_0 = arith.constant 0 : i32
    %c0_i32_1 = arith.constant 0 : i32
    return %c0_i32, %c0_i32_0 : i32, i32
  }
  func.func @transform_6(%arg0: i32) -> (i32, i32) {
    %c0_i32 = arith.constant 0 : i32
    %c0_i32_0 = arith.constant 0 : i32
    return %arg0, %c0_i32 : i32, i32
  }
  func.func @transform_7(%arg0: i32) -> (i32, i32) {
    %c0_i32 = arith.constant 0 : i32
    %c0_i32_0 = arith.constant 0 : i32
    return %c0_i32, %arg0 : i32, i32
  }
}

</mosaic_0001>

<llo_original>
// kernel: tpu_custom_call.1
$region0: #{tpu_custom_call.1}
  #allocation0 [shape = 'u32[]', space=smem, size = 0x4, offset = 0x4, fixed_abs, tag = 'smem constant byte address 0x4 - core index']
  #allocation1 [shape = 'u32[144,128]{1,0:T(1,128)}', space=vmem, size = 0x12000, scoped, tag = 'internal scratch']
  #allocation2 [shape = 'f32[4,8]{1,0:T(4,128)}', space=vmem, size = 0x800, scoped, tag = 'scratch operand']
  %s0 = inlined_call_operand.vmem [shape: f32[8,32], index: 0, kind: input, shape index: {}]
  %s1 = inlined_call_operand.vmem [shape: f32[4,32], index: 1, kind: input, shape index: {}]
  %s2 = inlined_call_operand.vmem [shape: f32[4,32], index: 2, kind: input, shape index: {}]
  %s3 = inlined_call_operand.vmem [shape: f32[4,4], index: 3, kind: input, shape index: {}]
  %s4 = inlined_call_operand.vmem [shape: f32[4,1], index: 4, kind: input, shape index: {}]
  %s5 = inlined_call_operand.vmem [shape: f32[4,1], index: 5, kind: input, shape index: {}]
  %s6 = inlined_call_operand.hbm [shape: f32[8,32], index: 6, kind: output, shape index: {0}]
  %s7 = inlined_call_operand.hbm [shape: f32[1,8], index: 7, kind: output, shape index: {1}]
  %8 = xla_tuple %s6, %s7
  %s9 = sld [smem:[#allocation0]]
  $region42: #{tpu_custom_call.1} parent=0
    _
  %s11 = ssub.s32 1, %s9
  %s12 = scalar_select 0, %s11, %s9
  $region1: #{tpu_custom_call.1} parent=0
    #allocation3 [shape = 'u8[4096]{0}', space=vmem, size = 0x1000, scoped, tag = 'output window, operand 0, single buffered']
    #allocation4 [shape = 's32[1]{0}', space=sflag, size = 0x4, scoped, tag = 'scoped memory for tpu_custom_call.1']
    #allocation5 [shape = 'u8[512]{0}', space=vmem, size = 0x400, scoped, tag = 'output window, operand 1, single buffered']
    #allocation6 [shape = 's32[1]{0}', space=sflag, size = 0x4, scoped, tag = 'scoped memory for tpu_custom_call.1']
    %13 = vsyncpa [#allocation4], 0
    %14 = vsyncpa [#allocation6], 0
    // Predicated region
    $region2: #{tpu_custom_call.1} parent=1 // pred_check
      _
    $region3: #{tpu_custom_call.1} parent=1 // pred_check_branch
      %16 = sbr.rel (0) target = $region5
    $region4: #{tpu_custom_call.1} parent=1 // pred_region
      _
    $region5: #{tpu_custom_call.1} parent=1 // pred_fallthru
      _
    // Predicated region
    $region6: #{tpu_custom_call.1} parent=1 // pred_check
      _
    $region7: #{tpu_custom_call.1} parent=1 // pred_check_branch
      %18 = sbr.rel (0) target = $region9
    $region8: #{tpu_custom_call.1} parent=1 // pred_region
      _
    $region9: #{tpu_custom_call.1} parent=1 // pred_fallthru
      _
    // Predicated region
    $region10: #{tpu_custom_call.1} parent=1 // pred_check
      _
    $region11: #{tpu_custom_call.1} parent=1 // pred_check_branch
      %20 = sbr.rel (0) target = $region13
    $region12: #{tpu_custom_call.1} parent=1 // pred_region
      _
    $region13: #{tpu_custom_call.1} parent=1 // pred_fallthru
      _
    // Predicated region
    $region14: #{tpu_custom_call.1} parent=1 // pred_check
      _
    $region15: #{tpu_custom_call.1} parent=1 // pred_check_branch
      %22 = sbr.rel (0) target = $region17
    $region16: #{tpu_custom_call.1} parent=1 // pred_region
      _
    $region17: #{tpu_custom_call.1} parent=1 // pred_fallthru
      _
    // Predicated region
    $region18: #{tpu_custom_call.1} parent=1 // pred_check
      _
    $region19: #{tpu_custom_call.1} parent=1 // pred_check_branch
      %24 = sbr.rel (0) target = $region21
    $region20: #{tpu_custom_call.1} parent=1 // pred_region
      _
    $region21: #{tpu_custom_call.1} parent=1 // pred_fallthru
      _
    // Predicated region
    $region22: #{tpu_custom_call.1} parent=1 // pred_check
      _
    $region23: #{tpu_custom_call.1} parent=1 // pred_check_branch
      %26 = sbr.rel (0) target = $region25
    $region24: #{tpu_custom_call.1} parent=1 // pred_region
      _
    $region25: #{tpu_custom_call.1} parent=1 // pred_fallthru
      _
    %v27 = vld [vmem:[%s0] sm:$0xff]
    %v28 = vld [vmem:[%s1] sm:$0xf]
    %v29 = vld [vmem:[%s2] sm:$0xf]
    %v30 = vld [vmem:[%s3] sm:$0xf]
    %v31 = vld [vmem:[%s4] sm:$0xf]
    %v32 = vld [vmem:[%s5] sm:$0xf]
    %34 = vset.pattern.permute.xlu0 0
    %35 = vperm.xlu0 %34, %v31
    %v36 = vpop.permute.xlu0 %35
    %vm38 = vcmask 261120
    %v40 = vsel %vm38, %v29, 0
    %v43 = vsel %vm38, %v27, 0
    %45 = vmatprep.subr.mxu0 0.0
    %46 = vmatpush1.xpose.msra.mxu0 %v43
    %47 = vmatprep.subr.mxu0 0.0
    %48 = vmatpush1.xpose.msra.mxu0 0.0
    %49 = vmatprep.subr.mxu0 0.0
    %50 = vmatpush1.xpose.msra.mxu0 0.0
    %51 = vmatprep.subr.mxu0 0.0
    %52 = vmatpush1.xpose.msra.mxu0 0.0
    %53 = vmatprep.subr.mxu0 0.0
    %54 = vmatpush1.xpose.msra.mxu0 0.0
    %55 = vmatprep.subr.mxu0 0.0
    %56 = vmatpush1.xpose.msra.mxu0 0.0
    %57 = vmatprep.subr.mxu0 0.0
    %58 = vmatpush1.xpose.msra.mxu0 0.0
    %59 = vmatprep.subr.mxu0 0.0
    %60 = vmatpush1.xpose.msra.mxu0 0.0
    %61 = vmatprep.subr.mxu0 0.0
    %62 = vmatpush1.xpose.msra.mxu0 0.0
    %63 = vmatprep.subr.mxu0 0.0
    %64 = vmatpush1.xpose.msra.mxu0 0.0
    %65 = vmatprep.subr.mxu0 0.0
    %66 = vmatpush1.xpose.msra.mxu0 0.0
    %67 = vmatprep.subr.mxu0 0.0
    %68 = vmatpush1.xpose.msra.mxu0 0.0
    %69 = vmatprep.subr.mxu0 0.0
    %70 = vmatpush1.xpose.msra.mxu0 0.0
    %71 = vmatprep.subr.mxu0 0.0
    %72 = vmatpush1.xpose.msra.mxu0 0.0
    %73 = vmatprep.subr.mxu0 0.0
    %74 = vmatpush1.xpose.msra.mxu0 0.0
    %75 = vmatprep.subr.mxu0 0.0
    %76 = vmatpush1.xpose.msra.mxu0 0.0
    %77 = vmatprep.subr.mxu0 0.0
    %78 = vmatpush1.xpose.msra.mxu0 0.0
    %79 = vmatprep.subr.mxu0 0.0
    %80 = vmatpush1.xpose.msra.mxu0 0.0
    %81 = vmatprep.subr.mxu0 0.0
    %82 = vmatpush1.xpose.msra.mxu0 0.0
    %83 = vmatprep.subr.mxu0 0.0
    %84 = vmatpush1.xpose.msra.mxu0 0.0
    %85 = vmatprep.subr.mxu0 0.0
    %86 = vmatpush1.xpose.msra.mxu0 0.0
    %87 = vmatprep.subr.mxu0 0.0
    %88 = vmatpush1.xpose.msra.mxu0 0.0
    %89 = vmatprep.subr.mxu0 0.0
    %90 = vmatpush1.xpose.msra.mxu0 0.0
    %91 = vmatprep.subr.mxu0 0.0
    %92 = vmatpush1.xpose.msra.mxu0 0.0
    %93 = vmatprep.subr.mxu0 0.0
    %94 = vmatpush1.xpose.msra.mxu0 0.0
    %95 = vmatprep.subr.mxu0 0.0
    %96 = vmatpush1.xpose.msra.mxu0 0.0
    %97 = vmatprep.subr.mxu0 0.0
    %98 = vmatpush1.xpose.msra.mxu0 0.0
    %99 = vmatprep.subr.mxu0 0.0
    %100 = vmatpush1.xpose.msra.mxu0 0.0
    %101 = vmatprep.subr.mxu0 0.0
    %102 = vmatpush1.xpose.msra.mxu0 0.0
    %103 = vmatprep.subr.mxu0 0.0
    %104 = vmatpush1.xpose.msra.mxu0 0.0
    %105 = vmatprep.subr.mxu0 0.0
    %106 = vmatpush1.xpose.msra.mxu0 0.0
    %107 = vmatprep.subr.mxu0 0.0
    %108 = vmatpush1.xpose.msra.mxu0 0.0
    %109 = vmatprep.mubr.f32.mxu0 0.0
    %110 = vmatmul.mubr.f32.gmra.mrb[0].mxu0 %v40
    %v111 = vpop.f32.mrb[0].mxu0
    %v112 = vadd.f32 %v36, %v111
    %v113 = vpop.f32.mrb[0].mxu0
    %114 = vdwg.mxu0
    %v115 = vtanh.pop %v112
    %vm116 = vcmask 57344
    %117 = vst.msk [vmem:[#allocation2] sm:$0x1] %vm116, %v115
    %119 = vset.pattern.permute.xlu0 0
    %120 = vperm.xlu0 %119, %v30
    %v121 = vpop.permute.xlu0 %120
    %v123 = vlaneseq
    %v124 = vshrl.u32 %v123, 7
    %v125 = vsub.s32 0, %v124
    %v126 = vrot.slane %v115, %v125
    %v127 = vmul.f32 %v121, %v126
    %v128 = vadd.f32 %v112, %v127
    %v129 = vtanh.pop %v128
    %vm130 = vcmask 58369
    %131 = vst.msk [vmem:[#allocation2] sm:$0x2] %vm130, %v129
    %132 = vset.pattern.permute.xlu0 1
    %133 = vperm.xlu0 %132, %v30
    %v134 = vpop.permute.xlu0 %133
    %v136 = vlaneseq
    %v137 = vshrl.u32 %v136, 7
    %v138 = vsub.s32 1, %v137
    %v139 = vrot.slane %v129, %v138
    %v140 = vmul.f32 %v134, %v139
    %v141 = vadd.f32 %v128, %v140
    %v142 = vtanh.pop %v141
    %vm143 = vcmask 59394
    %144 = vst.msk [vmem:[#allocation2] sm:$0x4] %vm143, %v142
    %145 = vset.pattern.permute.xlu0 2
    %146 = vperm.xlu0 %145, %v30
    %v147 = vpop.permute.xlu0 %146
    %v149 = vlaneseq
    %v150 = vshrl.u32 %v149, 7
    %v151 = vsub.s32 2, %v150
    %v152 = vrot.slane %v142, %v151
    %v153 = vmul.f32 %v147, %v152
    %v154 = vadd.f32 %v141, %v153
    %v155 = vtanh.pop %v154
    %vm156 = vcmask 60419
    %157 = vst.msk [vmem:[#allocation2] sm:$0x8] %vm156, %v155
    %v158 = vld [vmem:[#allocation2] sm:$0xf]
    %159 = vxpose.xlu0.b32.start [1/16] %v158, 128
    %160 = vxpose.xlu0.b32.cont [2/16] 0.0, 128
    %161 = vxpose.xlu0.b32.cont [3/16] 0.0, 128
    %162 = vxpose.xlu0.b32.cont [4/16] 0.0, 128
    %163 = vxpose.xlu0.b32.cont [5/16] 0.0, 128
    %164 = vxpose.xlu0.b32.cont [6/16] 0.0, 128
    %165 = vxpose.xlu0.b32.cont [7/16] 0.0, 128
    %166 = vxpose.xlu0.b32.cont [8/16] 0.0, 128
    %167 = vxpose.xlu0.b32.cont [9/16] 0.0, 128
    %168 = vxpose.xlu0.b32.cont [10/16] 0.0, 128
    %169 = vxpose.xlu0.b32.cont [11/16] 0.0, 128
    %170 = vxpose.xlu0.b32.cont [12/16] 0.0, 128
    %171 = vxpose.xlu0.b32.cont [13/16] 0.0, 128
    %172 = vxpose.xlu0.b32.cont [14/16] 0.0, 128
    %173 = vxpose.xlu0.b32.cont [15/16] 0.0, 128
    %174 = vxpose.xlu0.b32.end [16/16] 0.0, 128
    %v175 = vpop.trf.xlu0
    %v176 = vpop.trf.xlu0
    %v177 = vpop.trf.xlu0
    %v178 = vpop.trf.xlu0
    %v179 = vpop.trf.xlu0
    %v180 = vpop.trf.xlu0
    %v181 = vpop.trf.xlu0
    %v182 = vpop.trf.xlu0
    %v183 = vpop.trf.xlu0
    %v184 = vpop.trf.xlu0
    %v185 = vpop.trf.xlu0
    %v186 = vpop.trf.xlu0
    %v187 = vpop.trf.xlu0
    %v188 = vpop.trf.xlu0
    %v189 = vpop.trf.xlu0
    %v190 = vpop.trf.xlu0
    %vm191 = vcmask 31744
    %v193 = vsel %vm191, %v175, 0
    %vm195 = vcmask 1043456
    %v197 = vsel %vm195, %v28, 0
    %199 = vmatprep.subr.mxu0 0.0
    %200 = vmatpush1.msra.mxu0 %v197
    %201 = vmatprep.subr.mxu0 0.0
    %202 = vmatpush1.msra.mxu0 0.0
    %203 = vmatprep.subr.mxu0 0.0
    %204 = vmatpush1.msra.mxu0 0.0
    %205 = vmatprep.subr.mxu0 0.0
    %206 = vmatpush1.msra.mxu0 0.0
    %207 = vmatprep.subr.mxu0 0.0
    %208 = vmatpush1.msra.mxu0 0.0
    %209 = vmatprep.subr.mxu0 0.0
    %210 = vmatpush1.msra.mxu0 0.0
    %211 = vmatprep.subr.mxu0 0.0
    %212 = vmatpush1.msra.mxu0 0.0
    %213 = vmatprep.subr.mxu0 0.0
    %214 = vmatpush1.msra.mxu0 0.0
    %215 = vmatprep.subr.mxu0 0.0
    %216 = vmatpush1.msra.mxu0 0.0
    %217 = vmatprep.subr.mxu0 0.0
    %218 = vmatpush1.msra.mxu0 0.0
    %219 = vmatprep.subr.mxu0 0.0
    %220 = vmatpush1.msra.mxu0 0.0
    %221 = vmatprep.subr.mxu0 0.0
    %222 = vmatpush1.msra.mxu0 0.0
    %223 = vmatprep.subr.mxu0 0.0
    %224 = vmatpush1.msra.mxu0 0.0
    %225 = vmatprep.subr.mxu0 0.0
    %226 = vmatpush1.msra.mxu0 0.0
    %227 = vmatprep.subr.mxu0 0.0
    %228 = vmatpush1.msra.mxu0 0.0
    %229 = vmatprep.subr.mxu0 0.0
    %230 = vmatpush1.msra.mxu0 0.0
    %231 = vmatprep.subr.mxu0 0.0
    %232 = vmatpush1.msra.mxu0 0.0
    %233 = vmatprep.subr.mxu0 0.0
    %234 = vmatpush1.msra.mxu0 0.0
    %235 = vmatprep.subr.mxu0 0.0
    %236 = vmatpush1.msra.mxu0 0.0
    %237 = vmatprep.subr.mxu0 0.0
    %238 = vmatpush1.msra.mxu0 0.0
    %239 = vmatprep.subr.mxu0 0.0
    %240 = vmatpush1.msra.mxu0 0.0
    %241 = vmatprep.subr.mxu0 0.0
    %242 = vmatpush1.msra.mxu0 0.0
    %243 = vmatprep.subr.mxu0 0.0
    %244 = vmatpush1.msra.mxu0 0.0
    %245 = vmatprep.subr.mxu0 0.0
    %246 = vmatpush1.msra.mxu0 0.0
    %247 = vmatprep.subr.mxu0 0.0
    %248 = vmatpush1.msra.mxu0 0.0
    %249 = vmatprep.subr.mxu0 0.0
    %250 = vmatpush1.msra.mxu0 0.0
    %251 = vmatprep.subr.mxu0 0.0
    %252 = vmatpush1.msra.mxu0 0.0
    %253 = vmatprep.subr.mxu0 0.0
    %254 = vmatpush1.msra.mxu0 0.0
    %255 = vmatprep.subr.mxu0 0.0
    %256 = vmatpush1.msra.mxu0 0.0
    %257 = vmatprep.subr.mxu0 0.0
    %258 = vmatpush1.msra.mxu0 0.0
    %259 = vmatprep.subr.mxu0 0.0
    %260 = vmatpush1.msra.mxu0 0.0
    %261 = vmatprep.subr.mxu0 0.0
    %262 = vmatpush1.msra.mxu0 0.0
    %263 = vmatprep.mubr.f32.mxu0 0.0
    %264 = vmatmul.mubr.f32.gmra.mrb[0].mxu0 %v193
    %v265 = vpop.f32.mrb[0].mxu0
    %v266 = vadd.f32 0.0, %v265
    %v267 = vpop.f32.mrb[0].mxu0
    %268 = vdwg.mxu0
    %v269 = vadd.f32 %v27, %v266
    %v270 = vmul.f32 %v158, %v158
    %v271 = vsub.f32 1.0, %v270
    %273 = vset.pattern.permute.xlu0 0
    %274 = vperm.xlu0 %273, %v32
    %v275 = vpop.permute.xlu0 %274
    %v277 = vmul.f32 %v271, %v275
    %v278 = vadd.f32 %v277, 1.0
    %v279 = vand.u32 2147483647, %v278
    %v280 = vadd.f32 %v279, 1e-10
    %v281 = vlog2.pop %v280
    %v282 = vmul.f32 %v281, 0.6931472
    %v283 = vsub.f32 0.0, %v282
    %vm284 = vcmask 60416
    %v285 = vsel %vm284, %v283, 0.0
    %v286 = vrot.slane %v285, 4
    %v287 = vadd.f32 %v285, %v286
    %v288 = vrot.slane %v287, 2
    %v289 = vadd.f32 %v287, %v288
    %v290 = vrot.slane %v289, 1
    %v291 = vadd.f32 %v289, %v290
    %292 = vst.msk [vmem:[#allocation3] sm:$0xff] %vm38, %v269
    %293 = vst.msk [vmem:[#allocation5] sm:$0x1] %vm116, %v291
    // Predicated region
    $region26: #{tpu_custom_call.1} parent=1 // pred_check
      _
    $region27: #{tpu_custom_call.1} parent=1 // pred_check_branch
      %295 = sbr.rel (0) target = $region29
    $region28: #{tpu_custom_call.1} parent=1 // pred_region
      %s297 = ssub.s32 128, 128
      %298 = vsyncadd [#allocation4], %s297
      %s300 = sshll.u32 [#allocation3], 4
      %s301 = int_to_ptr.vmem [resolvable:$true] %s300
      %303 = dma.vmem_to_hbm [thread:$0]  %s301, 128, %s6, [#allocation4]
    $region29: #{tpu_custom_call.1} parent=1 // pred_fallthru
      _
    // Predicated region
    $region30: #{tpu_custom_call.1} parent=1 // pred_check
      _
    $region31: #{tpu_custom_call.1} parent=1 // pred_check_branch
      %305 = sbr.rel (0) target = $region33
    $region32: #{tpu_custom_call.1} parent=1 // pred_region
      %s307 = ssub.s32 16, 16
      %308 = vsyncadd [#allocation6], %s307
      %s310 = sshll.u32 [#allocation5], 4
      %s311 = int_to_ptr.vmem [resolvable:$true] %s310
      %313 = dma.vmem_to_hbm [thread:$0]  %s311, 16, %s7, [#allocation6]
    $region33: #{tpu_custom_call.1} parent=1 // pred_fallthru
      _
    // Predicated region
    $region34: #{tpu_custom_call.1} parent=1 // pred_check
      _
    $region35: #{tpu_custom_call.1} parent=1 // pred_check_branch
      %315 = sbr.rel (0) target = $region37
    $region36: #{tpu_custom_call.1} parent=1 // pred_region
      %316 = dma.done [#allocation4], 128
    $region37: #{tpu_custom_call.1} parent=1 // pred_fallthru
      _
    // Predicated region
    $region38: #{tpu_custom_call.1} parent=1 // pred_check
      _
    $region39: #{tpu_custom_call.1} parent=1 // pred_check_branch
      %318 = sbr.rel (0) target = $region41
    $region40: #{tpu_custom_call.1} parent=1 // pred_region
      %319 = dma.done [#allocation6], 16
    $region41: #{tpu_custom_call.1} parent=1 // pred_fallthru
      _
    %320 = vsyncpa [#allocation4], 1
    %321 = vsyncpa [#allocation6], 1

</llo_original>
